<compile_context>
chip_gen: v7x
topology: tpu7x:2x2x1
jax: 0.10.0
libtpu: 0.0.40
codegen_flags: <defaults>
</compile_context>

<pallas_src>
import jax
import jax.numpy as jnp
from jax.experimental import pallas as pl
from jax.experimental.pallas import tpu as pltpu

H1 = 64          # fc1 output width (real)
H2 = 32          # fc2 output width (real)
H1P = 128        # fc1 width padded to a full lane group (contraction dim of matmul 2)
H2P = 40         # fc2 width + ones channel (33) rounded up to 8 sublanes
LANES = 128


def mlp_kernel(xT_ref, w1t_ref, w2t_ref, w3t_ref, o_ref):
    # xT_ref : (d_pad, TB)  features on sublanes, batch on lanes (lane-dense)
    # w1t_ref: (H1P, d_pad) W1_aug^T   (b1 folded via the ones row of xT)
    # w2t_ref: (H2P, H1P)   W2_aug^T   (b2 folded via the ones channel of h1)
    # w3t_ref: (8, H2P)     row 0 = [w3 | b3 | zeros]; rows 1..7 zero (sublane pad)
    # o_ref  : (1, TB)      lane-dense output block
    xT = xT_ref[...]
    h1 = jnp.maximum(
        jnp.dot(w1t_ref[...], xT, preferred_element_type=jnp.float32), 0.0)   # (H1P, TB)
    h2 = jnp.maximum(
        jnp.dot(w2t_ref[...], h1, preferred_element_type=jnp.float32), 0.0)   # (H2P, TB)
    y = jnp.dot(w3t_ref[...], h2, preferred_element_type=jnp.float32)         # (8, TB)
    o_ref[...] = y[0:1, :]


def pack_params(params):
    """Pad / fold / transpose the nn.Linear parameters into MXU-friendly slabs."""
    w1, b1 = params["w1"], params["b1"]      # (D, 64), (64,)
    w2, b2 = params["w2"], params["b2"]      # (64, 32), (32,)
    w3, b3 = params["w3"], params["b3"]      # (32, 1), (1,)
    d = w1.shape[0]
    d_pad = 8 * pl.cdiv(d + 1, 8)            # +1 row for the folded-bias "ones" channel

    # Layer 1 (augmented): row d carries b1; the extra 1.0 at column H1 keeps a
    # constant "ones" channel alive in h1 (used to fold b2 in layer 2).
    w1_aug = jnp.zeros((d_pad, H1P), jnp.float32)
    w1_aug = w1_aug.at[0:d, 0:H1].set(w1)
    w1_aug = w1_aug.at[d, 0:H1].set(b1)
    w1_aug = w1_aug.at[d, H1].set(1.0)
    w1t = w1_aug.T                            # (H1P, d_pad)

    # Layer 2 (augmented, shrunk to H2P=40 output sublanes): row H1 carries b2;
    # the 1.0 at column H2 propagates the ones channel into h2 (folds b3).
    w2_aug = jnp.zeros((H1P, H2P), jnp.float32)
    w2_aug = w2_aug.at[0:H1, 0:H2].set(w2)
    w2_aug = w2_aug.at[H1, 0:H2].set(b2)
    w2_aug = w2_aug.at[H1, H2].set(1.0)
    w2t = w2_aug.T                            # (H2P, H1P)

    # Layer 3 as an 8-sublane slab over H2P lanes; only row 0 is non-zero.
    w3t = jnp.zeros((8, H2P), jnp.float32)
    w3t = w3t.at[0, 0:H2].set(w3[:, 0])
    w3t = w3t.at[0, H2].set(b3[0])
    return w1t, w2t, w3t, d_pad


def regression_model_forward(x, params, *, tb=4096):
    """x: (B, D) float32 -> (B, 1) float32.  Same math as the PyTorch module."""
    B, D = x.shape
    w1t, w2t, w3t, d_pad = pack_params(params)

    # --- batch tile selection -------------------------------------------------
    # TB must be a multiple of 128 (lane-dense blocks).  Big tiles amortize the
    # ~0.35 us per-grid-step overhead; once B >= 256, cap TB at ~half the batch
    # so the grid has >= 2 tiles and ("parallel",) splits across v7x's two TCs.
    tb = max(LANES, (tb // LANES) * LANES)
    if B >= 2 * LANES:
        tb = min(tb, LANES * pl.cdiv(B, 2 * LANES))
    TB = min(tb, LANES * pl.cdiv(B, LANES))
    B_pad = TB * pl.cdiv(B, TB)

    # --- fused transposed input build ----------------------------------------
    # Build xT = [x^T ; ones ; zero-pad] directly in (d_pad, B_pad) layout: one
    # concat + one pad (fused by XLA) instead of zeros -> scatter -> transpose.
    # Padded batch lanes get a 0 in the ones row, so they stay exactly zero
    # through all three layers and are sliced off at the end.
    xT = jnp.concatenate(
        [x.astype(jnp.float32).T, jnp.ones((1, B), jnp.float32)], axis=0)
    xT = jnp.pad(xT, ((0, d_pad - (D + 1)), (0, B_pad - B)))

    out = pl.pallas_call(
        mlp_kernel,
        out_shape=jax.ShapeDtypeStruct((1, B_pad), jnp.float32),
        grid_spec=pltpu.PrefetchScalarGridSpec(
            num_scalar_prefetch=0,
            grid=(B_pad // TB,),
            in_specs=[
                pl.BlockSpec((d_pad, TB), lambda i: (0, i)),    # streamed x tiles
                # Weight slabs: constant index maps -> VMEM-resident, never
                # re-DMA'd per step (only ~25 KB total, so default buffering
                # is harmless).
                pl.BlockSpec((H1P, d_pad), lambda i: (0, 0)),   # resident W1^T
                pl.BlockSpec((H2P, H1P), lambda i: (0, 0)),     # resident W2^T
                pl.BlockSpec((8, H2P), lambda i: (0, 0)),       # resident w3 slab
            ],
            out_specs=pl.BlockSpec((1, TB), lambda i: (0, i)),  # lane-dense output
        ),
        compiler_params=pltpu.CompilerParams(
            dimension_semantics=("parallel",),        # shard batch tiles across TCs
            vmem_limit_bytes=32 * 1024 * 1024,        # safe on v5e/v6e/v7x at TB<=4096
        ),
        cost_estimate=pl.CostEstimate(
            flops=2 * B_pad * (d_pad * H1P + H1P * H2P + H2P * 8),
            transcendentals=0,
            bytes_accessed=4 * (d_pad * B_pad + H1P * d_pad + H2P * H1P
                                + 8 * H2P + B_pad),
        ),
    )(xT, w1t, w2t, w3t)

    return out[0, :B, None]       # (B, 1), matching the PyTorch module output


def init_params(key, input_dim):
    """Deterministic nn.Linear-style init; weights stored (in, out) so fwd is x @ W + b."""
    ks = jax.random.split(key, 6)

    def uniform(k, shape, fan_in):
        bound = 1.0 / jnp.sqrt(fan_in)
        return jax.random.uniform(k, shape, jnp.float32, -bound, bound)

    return {
        "w1": uniform(ks[0], (input_dim, H1), input_dim),
        "b1": uniform(ks[1], (H1,), input_dim),
        "w2": uniform(ks[2], (H1, H2), H1),
        "b2": uniform(ks[3], (H2,), H1),
        "w3": uniform(ks[4], (H2, 1), H2),
        "b3": uniform(ks[5], (1,), H2),
    }


def reference_forward(x, p):
    h1 = jnp.maximum(x @ p["w1"] + p["b1"], 0.0)
    h2 = jnp.maximum(h1 @ p["w2"] + p["b2"], 0.0)
    return h2 @ p["w3"] + p["b3"]


if __name__ == "__main__":
    key = jax.random.PRNGKey(0)
    k_x, k_p = jax.random.split(key)

    # The dataframe drops 'rent', leaving 5 feature columns: area, bed, bath, age, dist.
    batch, input_dim = 8, 5
    x = jax.random.normal(k_x, (batch, input_dim), dtype=jnp.float32)
    params = init_params(k_p, input_dim)

    out = regression_model_forward(x, params)
    out = jax.block_until_ready(out)

    ref = reference_forward(x, params)
    assert out.shape == (batch, 1)
    assert jnp.allclose(out, ref, atol=1e-5, rtol=1e-5), (
        f"max abs err {jnp.max(jnp.abs(out - ref))}")

    print("KERNEL_OK")
</pallas_src>

<mosaic_0001>
module attributes {stable_mosaic.version = 11 : i64} {
  func.func @mlp_kernel(%arg0: i32, %arg1: memref<8x128xf32, #tpu.memory_space<vmem>>, %arg2: memref<128x8xf32, #tpu.memory_space<vmem>>, %arg3: memref<40x128xf32, #tpu.memory_space<vmem>>, %arg4: memref<8x40xf32, #tpu.memory_space<vmem>>, %arg5: memref<1x128xf32, #tpu.memory_space<vmem>>) attributes {dimension_semantics = [#tpu.dimension_semantics<parallel>], iteration_bounds = array<i64: 1>, scalar_prefetch = 0 : i64, scratch_operands = 0 : i64, tpu.core_type = #tpu.core_type<tc>, window_params = [{transform_indices = @transform_0, window_bounds = array<i64: 8, 128>}, {pipeline_mode = #tpu.pipeline_mode<synchronous>, transform_indices = @transform_1, window_bounds = array<i64: 128, 8>}, {pipeline_mode = #tpu.pipeline_mode<synchronous>, transform_indices = @transform_2, window_bounds = array<i64: 40, 128>}, {pipeline_mode = #tpu.pipeline_mode<synchronous>, transform_indices = @transform_3, window_bounds = array<i64: 8, 40>}, {transform_indices = @transform_4, window_bounds = array<i64: 1, 128>}]} {
    %c0 = arith.constant 0 : index
    %c0_0 = arith.constant 0 : index
    %0 = vector.load %arg1[%c0, %c0_0] : memref<8x128xf32, #tpu.memory_space<vmem>>, vector<8x128xf32>
    %c0_1 = arith.constant 0 : index
    %c0_2 = arith.constant 0 : index
    %1 = vector.load %arg2[%c0_1, %c0_2] : memref<128x8xf32, #tpu.memory_space<vmem>>, vector<128x8xf32>
    %cst = arith.constant dense<0.000000e+00> : vector<128x128xf32>
    %2 = tpu.matmul %1, %0, %cst {dimension_numbers = #tpu.dot_dimension_numbers<[1], [0], [0], [1], [0, 0, 1, 1], [], []>} : vector<128x8xf32>, vector<8x128xf32>, vector<128x128xf32> -> vector<128x128xf32>
    %cst_3 = arith.constant 0.000000e+00 : f32
    %3 = vector.broadcast %cst_3 : f32 to vector<128x128xf32>
    %4 = arith.maximumf %2, %3 : vector<128x128xf32>
    %c0_4 = arith.constant 0 : index
    %c0_5 = arith.constant 0 : index
    %5 = vector.load %arg3[%c0_4, %c0_5] : memref<40x128xf32, #tpu.memory_space<vmem>>, vector<40x128xf32>
    %cst_6 = arith.constant dense<0.000000e+00> : vector<40x128xf32>
    %6 = tpu.matmul %5, %4, %cst_6 {dimension_numbers = #tpu.dot_dimension_numbers<[1], [0], [0], [1], [0, 0, 1, 1], [], []>} : vector<40x128xf32>, vector<128x128xf32>, vector<40x128xf32> -> vector<40x128xf32>
    %cst_7 = arith.constant 0.000000e+00 : f32
    %7 = vector.broadcast %cst_7 : f32 to vector<40x128xf32>
    %8 = arith.maximumf %6, %7 : vector<40x128xf32>
    %c0_8 = arith.constant 0 : index
    %c0_9 = arith.constant 0 : index
    %9 = vector.load %arg4[%c0_8, %c0_9] : memref<8x40xf32, #tpu.memory_space<vmem>>, vector<8x40xf32>
    %cst_10 = arith.constant dense<0.000000e+00> : vector<8x128xf32>
    %10 = tpu.matmul %9, %8, %cst_10 {dimension_numbers = #tpu.dot_dimension_numbers<[1], [0], [0], [1], [0, 0, 1, 1], [], []>} : vector<8x40xf32>, vector<40x128xf32>, vector<8x128xf32> -> vector<8x128xf32>
    %11 = vector.extract_strided_slice %10 {offsets = [0, 0], sizes = [1, 128], strides = [1, 1]} : vector<8x128xf32> to vector<1x128xf32>
    %c0_11 = arith.constant 0 : index
    %c0_12 = arith.constant 0 : index
    %12 = vector.load %arg5[%c0_11, %c0_12] : memref<1x128xf32, #tpu.memory_space<vmem>>, vector<1x128xf32>
    tpu.vector_store %arg5[%c0_11, %c0_12], %11 {strides = array<i32>} : memref<1x128xf32, #tpu.memory_space<vmem>>, vector<1x128xf32>,
    return
  }
  func.func @transform_0(%arg0: i32) -> (i32, i32) {
    %c0_i32 = arith.constant 0 : i32
    %c0_i32_0 = arith.constant 0 : i32
    return %c0_i32, %arg0 : i32, i32
  }
  func.func @transform_1(%arg0: i32) -> (i32, i32) {
    %c0_i32 = arith.constant 0 : i32
    %c0_i32_0 = arith.constant 0 : i32
    %c0_i32_1 = arith.constant 0 : i32
    return %c0_i32, %c0_i32_0 : i32, i32
  }
  func.func @transform_2(%arg0: i32) -> (i32, i32) {
    %c0_i32 = arith.constant 0 : i32
    %c0_i32_0 = arith.constant 0 : i32
    %c0_i32_1 = arith.constant 0 : i32
    return %c0_i32, %c0_i32_0 : i32, i32
  }
  func.func @transform_3(%arg0: i32) -> (i32, i32) {
    %c0_i32 = arith.constant 0 : i32
    %c0_i32_0 = arith.constant 0 : i32
    %c0_i32_1 = arith.constant 0 : i32
    return %c0_i32, %c0_i32_0 : i32, i32
  }
  func.func @transform_4(%arg0: i32) -> (i32, i32) {
    %c0_i32 = arith.constant 0 : i32
    %c0_i32_0 = arith.constant 0 : i32
    return %c0_i32, %arg0 : i32, i32
  }
}

</mosaic_0001>

<llo_original>
// kernel: tpu_custom_call.1
$region0: #{tpu_custom_call.1}
  #allocation0 [shape = 'u32[]', space=smem, size = 0x4, offset = 0x4, fixed_abs, tag = 'smem constant byte address 0x4 - core index']
  #allocation1 [shape = 'u32[144,128]{1,0:T(1,128)}', space=vmem, size = 0x12000, scoped, tag = 'internal scratch']
  %s0 = inlined_call_operand.vmem [shape: f32[8,128], index: 0, kind: input, shape index: {}]
  %s1 = inlined_call_operand.vmem [shape: f32[128,8], index: 1, kind: input, shape index: {}]
  %s2 = inlined_call_operand.vmem [shape: f32[40,128], index: 2, kind: input, shape index: {}]
  %s3 = inlined_call_operand.vmem [shape: f32[8,40], index: 3, kind: input, shape index: {}]
  %s4 = inlined_call_operand.hbm [shape: f32[1,128], index: 4, kind: output, shape index: {}]
  %s5 = sld [smem:[#allocation0]]
  $region26: #{tpu_custom_call.1} parent=0
    _
  %s7 = ssub.s32 1, %s5
  %s8 = scalar_select 0, %s7, %s5
  $region1: #{tpu_custom_call.1} parent=0
    #allocation2 [shape = 'u8[512]{0}', space=vmem, size = 0x400, scoped, tag = 'output window, operand 0, single buffered']
    #allocation3 [shape = 's32[1]{0}', space=sflag, size = 0x4, scoped, tag = 'scoped memory for tpu_custom_call.1']
    %9 = vsyncpa [#allocation3], 0
    // Predicated region
    $region2: #{tpu_custom_call.1} parent=1 // pred_check
      _
    $region3: #{tpu_custom_call.1} parent=1 // pred_check_branch
      %11 = sbr.rel (0) target = $region5
    $region4: #{tpu_custom_call.1} parent=1 // pred_region
      _
    $region5: #{tpu_custom_call.1} parent=1 // pred_fallthru
      _
    // Predicated region
    $region6: #{tpu_custom_call.1} parent=1 // pred_check
      _
    $region7: #{tpu_custom_call.1} parent=1 // pred_check_branch
      %13 = sbr.rel (0) target = $region9
    $region8: #{tpu_custom_call.1} parent=1 // pred_region
      _
    $region9: #{tpu_custom_call.1} parent=1 // pred_fallthru
      _
    // Predicated region
    $region10: #{tpu_custom_call.1} parent=1 // pred_check
      _
    $region11: #{tpu_custom_call.1} parent=1 // pred_check_branch
      %15 = sbr.rel (0) target = $region13
    $region12: #{tpu_custom_call.1} parent=1 // pred_region
      _
    $region13: #{tpu_custom_call.1} parent=1 // pred_fallthru
      _
    // Predicated region
    $region14: #{tpu_custom_call.1} parent=1 // pred_check
      _
    $region15: #{tpu_custom_call.1} parent=1 // pred_check_branch
      %17 = sbr.rel (0) target = $region17
    $region16: #{tpu_custom_call.1} parent=1 // pred_region
      _
    $region17: #{tpu_custom_call.1} parent=1 // pred_fallthru
      _
    %v18 = vld [vmem:[%s0] sm:$0xff]
    %v19 = vld [vmem:[%s1] sm:$0xff]
    %v20 = vld [vmem:[%s1 + $0x8] sm:$0xff]
    %v21 = vld [vmem:[%s1 + $0x10] sm:$0xff]
    %v22 = vld [vmem:[%s1 + $0x18] sm:$0xff]
    %v23 = vld [vmem:[%s1 + $0x20] sm:$0xff]
    %v24 = vld [vmem:[%s1 + $0x28] sm:$0xff]
    %v25 = vld [vmem:[%s1 + $0x30] sm:$0xff]
    %v26 = vld [vmem:[%s1 + $0x38] sm:$0xff]
    %v27 = vld [vmem:[%s1 + $0x40] sm:$0xff]
    %v28 = vld [vmem:[%s1 + $0x48] sm:$0xff]
    %v29 = vld [vmem:[%s1 + $0x50] sm:$0xff]
    %v30 = vld [vmem:[%s1 + $0x58] sm:$0xff]
    %v31 = vld [vmem:[%s1 + $0x60] sm:$0xff]
    %v32 = vld [vmem:[%s1 + $0x68] sm:$0xff]
    %v33 = vld [vmem:[%s1 + $0x70] sm:$0xff]
    %v34 = vld [vmem:[%s1 + $0x78] sm:$0xff]
    %vm35 = vcmask 64512
    %v37 = vsel %vm35, %v19, 0
    %v40 = vsel %vm35, %v20, 0
    %v43 = vsel %vm35, %v21, 0
    %v46 = vsel %vm35, %v22, 0
    %v49 = vsel %vm35, %v23, 0
    %v52 = vsel %vm35, %v24, 0
    %v55 = vsel %vm35, %v25, 0
    %v58 = vsel %vm35, %v26, 0
    %v61 = vsel %vm35, %v27, 0
    %v64 = vsel %vm35, %v28, 0
    %v67 = vsel %vm35, %v29, 0
    %v70 = vsel %vm35, %v30, 0
    %v73 = vsel %vm35, %v31, 0
    %v76 = vsel %vm35, %v32, 0
    %v79 = vsel %vm35, %v33, 0
    %v82 = vsel %vm35, %v34, 0
    %84 = vmatprep.subr.mxu0 0.0
    %85 = vmatpush1.msra.mxu0 %v18
    %86 = vmatprep.subr.mxu0 0.0
    %87 = vmatpush1.msra.mxu0 0.0
    %88 = vmatprep.subr.mxu0 0.0
    %89 = vmatpush1.msra.mxu0 0.0
    %90 = vmatprep.subr.mxu0 0.0
    %91 = vmatpush1.msra.mxu0 0.0
    %92 = vmatprep.subr.mxu0 0.0
    %93 = vmatpush1.msra.mxu0 0.0
    %94 = vmatprep.subr.mxu0 0.0
    %95 = vmatpush1.msra.mxu0 0.0
    %96 = vmatprep.subr.mxu0 0.0
    %97 = vmatpush1.msra.mxu0 0.0
    %98 = vmatprep.subr.mxu0 0.0
    %99 = vmatpush1.msra.mxu0 0.0
    %100 = vmatprep.subr.mxu0 0.0
    %101 = vmatpush1.msra.mxu0 0.0
    %102 = vmatprep.subr.mxu0 0.0
    %103 = vmatpush1.msra.mxu0 0.0
    %104 = vmatprep.subr.mxu0 0.0
    %105 = vmatpush1.msra.mxu0 0.0
    %106 = vmatprep.subr.mxu0 0.0
    %107 = vmatpush1.msra.mxu0 0.0
    %108 = vmatprep.subr.mxu0 0.0
    %109 = vmatpush1.msra.mxu0 0.0
    %110 = vmatprep.subr.mxu0 0.0
    %111 = vmatpush1.msra.mxu0 0.0
    %112 = vmatprep.subr.mxu0 0.0
    %113 = vmatpush1.msra.mxu0 0.0
    %114 = vmatprep.subr.mxu0 0.0
    %115 = vmatpush1.msra.mxu0 0.0
    %116 = vmatprep.subr.mxu0 0.0
    %117 = vmatpush1.msra.mxu0 0.0
    %118 = vmatprep.subr.mxu0 0.0
    %119 = vmatpush1.msra.mxu0 0.0
    %120 = vmatprep.subr.mxu0 0.0
    %121 = vmatpush1.msra.mxu0 0.0
    %122 = vmatprep.subr.mxu0 0.0
    %123 = vmatpush1.msra.mxu0 0.0
    %124 = vmatprep.subr.mxu0 0.0
    %125 = vmatpush1.msra.mxu0 0.0
    %126 = vmatprep.subr.mxu0 0.0
    %127 = vmatpush1.msra.mxu0 0.0
    %128 = vmatprep.subr.mxu0 0.0
    %129 = vmatpush1.msra.mxu0 0.0
    %130 = vmatprep.subr.mxu0 0.0
    %131 = vmatpush1.msra.mxu0 0.0
    %132 = vmatprep.subr.mxu0 0.0
    %133 = vmatpush1.msra.mxu0 0.0
    %134 = vmatprep.subr.mxu0 0.0
    %135 = vmatpush1.msra.mxu0 0.0
    %136 = vmatprep.subr.mxu0 0.0
    %137 = vmatpush1.msra.mxu0 0.0
    %138 = vmatprep.subr.mxu0 0.0
    %139 = vmatpush1.msra.mxu0 0.0
    %140 = vmatprep.subr.mxu0 0.0
    %141 = vmatpush1.msra.mxu0 0.0
    %142 = vmatprep.subr.mxu0 0.0
    %143 = vmatpush1.msra.mxu0 0.0
    %144 = vmatprep.subr.mxu0 0.0
    %145 = vmatpush1.msra.mxu0 0.0
    %146 = vmatprep.subr.mxu0 0.0
    %147 = vmatpush1.msra.mxu0 0.0
    %148 = vmatprep.mubr.f32.mxu0 0.0
    %149 = vmatmul.mubr.f32.gmra.mrb[0].mxu0 %v37
    %v150 = vpop.f32.mrb[0].mxu0
    %v151 = vadd.f32 0.0, %v150
    %v152 = vpop.f32.mrb[0].mxu0
    %153 = vmatprep.mubr.f32.mxu0 0.0
    %154 = vmatmul.mubr.f32.gmra.mrb[0].mxu0 %v40
    %v155 = vpop.f32.mrb[0].mxu0
    %v156 = vadd.f32 0.0, %v155
    %v157 = vpop.f32.mrb[0].mxu0
    %158 = vmatprep.mubr.f32.mxu0 0.0
    %159 = vmatmul.mubr.f32.gmra.mrb[0].mxu0 %v43
    %v160 = vpop.f32.mrb[0].mxu0
    %v161 = vadd.f32 0.0, %v160
    %v162 = vpop.f32.mrb[0].mxu0
    %163 = vmatprep.mubr.f32.mxu0 0.0
    %164 = vmatmul.mubr.f32.gmra.mrb[0].mxu0 %v46
    %v165 = vpop.f32.mrb[0].mxu0
    %v166 = vadd.f32 0.0, %v165
    %v167 = vpop.f32.mrb[0].mxu0
    %168 = vmatprep.mubr.f32.mxu0 0.0
    %169 = vmatmul.mubr.f32.gmra.mrb[0].mxu0 %v49
    %v170 = vpop.f32.mrb[0].mxu0
    %v171 = vadd.f32 0.0, %v170
    %v172 = vpop.f32.mrb[0].mxu0
    %173 = vmatprep.mubr.f32.mxu0 0.0
    %174 = vmatmul.mubr.f32.gmra.mrb[0].mxu0 %v52
    %v175 = vpop.f32.mrb[0].mxu0
    %v176 = vadd.f32 0.0, %v175
    %v177 = vpop.f32.mrb[0].mxu0
    %178 = vmatprep.mubr.f32.mxu0 0.0
    %179 = vmatmul.mubr.f32.gmra.mrb[0].mxu0 %v55
    %v180 = vpop.f32.mrb[0].mxu0
    %v181 = vadd.f32 0.0, %v180
    %v182 = vpop.f32.mrb[0].mxu0
    %183 = vmatprep.mubr.f32.mxu0 0.0
    %184 = vmatmul.mubr.f32.gmra.mrb[0].mxu0 %v58
    %v185 = vpop.f32.mrb[0].mxu0
    %v186 = vadd.f32 0.0, %v185
    %v187 = vpop.f32.mrb[0].mxu0
    %188 = vmatprep.mubr.f32.mxu0 0.0
    %189 = vmatmul.mubr.f32.gmra.mrb[0].mxu0 %v61
    %v190 = vpop.f32.mrb[0].mxu0
    %v191 = vadd.f32 0.0, %v190
    %v192 = vpop.f32.mrb[0].mxu0
    %193 = vmatprep.mubr.f32.mxu0 0.0
    %194 = vmatmul.mubr.f32.gmra.mrb[0].mxu0 %v64
    %v195 = vpop.f32.mrb[0].mxu0
    %v196 = vadd.f32 0.0, %v195
    %v197 = vpop.f32.mrb[0].mxu0
    %198 = vmatprep.mubr.f32.mxu0 0.0
    %199 = vmatmul.mubr.f32.gmra.mrb[0].mxu0 %v67
    %v200 = vpop.f32.mrb[0].mxu0
    %v201 = vadd.f32 0.0, %v200
    %v202 = vpop.f32.mrb[0].mxu0
    %203 = vmatprep.mubr.f32.mxu0 0.0
    %204 = vmatmul.mubr.f32.gmra.mrb[0].mxu0 %v70
    %v205 = vpop.f32.mrb[0].mxu0
    %v206 = vadd.f32 0.0, %v205
    %v207 = vpop.f32.mrb[0].mxu0
    %208 = vmatprep.mubr.f32.mxu0 0.0
    %209 = vmatmul.mubr.f32.gmra.mrb[0].mxu0 %v73
    %v210 = vpop.f32.mrb[0].mxu0
    %v211 = vadd.f32 0.0, %v210
    %v212 = vpop.f32.mrb[0].mxu0
    %213 = vmatprep.mubr.f32.mxu0 0.0
    %214 = vmatmul.mubr.f32.gmra.mrb[0].mxu0 %v76
    %v215 = vpop.f32.mrb[0].mxu0
    %v216 = vadd.f32 0.0, %v215
    %v217 = vpop.f32.mrb[0].mxu0
    %218 = vmatprep.mubr.f32.mxu0 0.0
    %219 = vmatmul.mubr.f32.gmra.mrb[0].mxu0 %v79
    %v220 = vpop.f32.mrb[0].mxu0
    %v221 = vadd.f32 0.0, %v220
    %v222 = vpop.f32.mrb[0].mxu0
    %223 = vmatprep.mubr.f32.mxu0 0.0
    %224 = vmatmul.mubr.f32.gmra.mrb[0].mxu0 %v82
    %v225 = vpop.f32.mrb[0].mxu0
    %v226 = vadd.f32 0.0, %v225
    %v227 = vpop.f32.mrb[0].mxu0
    %228 = vdwg.mxu0
    %v229 = vmax.f32 %v151, 0.0
    %v230 = vmax.f32 %v156, 0.0
    %v231 = vmax.f32 %v161, 0.0
    %v232 = vmax.f32 %v166, 0.0
    %v233 = vmax.f32 %v171, 0.0
    %v234 = vmax.f32 %v176, 0.0
    %v235 = vmax.f32 %v181, 0.0
    %v236 = vmax.f32 %v186, 0.0
    %v237 = vmax.f32 %v191, 0.0
    %v238 = vmax.f32 %v196, 0.0
    %v239 = vmax.f32 %v201, 0.0
    %v240 = vmax.f32 %v206, 0.0
    %v241 = vmax.f32 %v211, 0.0
    %v242 = vmax.f32 %v216, 0.0
    %v243 = vmax.f32 %v221, 0.0
    %v244 = vmax.f32 %v226, 0.0
    %v245 = vld [vmem:[%s2] sm:$0xff]
    %v246 = vld [vmem:[%s2 + $0x8] sm:$0xff]
    %v247 = vld [vmem:[%s2 + $0x10] sm:$0xff]
    %v248 = vld [vmem:[%s2 + $0x18] sm:$0xff]
    %v249 = vld [vmem:[%s2 + $0x20] sm:$0xff]
    %250 = vmatprep.subr.mxu0 0.0
    %251 = vmatpush1.msra.mxu0 %v229
    %252 = vmatprep.subr.mxu0 0.0
    %253 = vmatpush1.msra.mxu0 %v230
    %254 = vmatprep.subr.mxu0 0.0
    %255 = vmatpush1.msra.mxu0 %v231
    %256 = vmatprep.subr.mxu0 0.0
    %257 = vmatpush1.msra.mxu0 %v232
    %258 = vmatprep.subr.mxu0 0.0
    %259 = vmatpush1.msra.mxu0 %v233
    %260 = vmatprep.subr.mxu0 0.0
    %261 = vmatpush1.msra.mxu0 %v234
    %262 = vmatprep.subr.mxu0 0.0
    %263 = vmatpush1.msra.mxu0 %v235
    %264 = vmatprep.subr.mxu0 0.0
    %265 = vmatpush1.msra.mxu0 %v236
    %266 = vmatprep.subr.mxu0 0.0
    %267 = vmatpush1.msra.mxu0 %v237
    %268 = vmatprep.subr.mxu0 0.0
    %269 = vmatpush1.msra.mxu0 %v238
    %270 = vmatprep.subr.mxu0 0.0
    %271 = vmatpush1.msra.mxu0 %v239
    %272 = vmatprep.subr.mxu0 0.0
    %273 = vmatpush1.msra.mxu0 %v240
    %274 = vmatprep.subr.mxu0 0.0
    %275 = vmatpush1.msra.mxu0 %v241
    %276 = vmatprep.subr.mxu0 0.0
    %277 = vmatpush1.msra.mxu0 %v242
    %278 = vmatprep.subr.mxu0 0.0
    %279 = vmatpush1.msra.mxu0 %v243
    %280 = vmatprep.subr.mxu0 0.0
    %281 = vmatpush1.msra.mxu0 %v244
    %282 = vmatprep.subr.mxu0 0.0
    %283 = vmatpush1.msra.mxu0 0.0
    %284 = vmatprep.subr.mxu0 0.0
    %285 = vmatpush1.msra.mxu0 0.0
    %286 = vmatprep.subr.mxu0 0.0
    %287 = vmatpush1.msra.mxu0 0.0
    %288 = vmatprep.subr.mxu0 0.0
    %289 = vmatpush1.msra.mxu0 0.0
    %290 = vmatprep.subr.mxu0 0.0
    %291 = vmatpush1.msra.mxu0 0.0
    %292 = vmatprep.subr.mxu0 0.0
    %293 = vmatpush1.msra.mxu0 0.0
    %294 = vmatprep.subr.mxu0 0.0
    %295 = vmatpush1.msra.mxu0 0.0
    %296 = vmatprep.subr.mxu0 0.0
    %297 = vmatpush1.msra.mxu0 0.0
    %298 = vmatprep.subr.mxu0 0.0
    %299 = vmatpush1.msra.mxu0 0.0
    %300 = vmatprep.subr.mxu0 0.0
    %301 = vmatpush1.msra.mxu0 0.0
    %302 = vmatprep.subr.mxu0 0.0
    %303 = vmatpush1.msra.mxu0 0.0
    %304 = vmatprep.subr.mxu0 0.0
    %305 = vmatpush1.msra.mxu0 0.0
    %306 = vmatprep.subr.mxu0 0.0
    %307 = vmatpush1.msra.mxu0 0.0
    %308 = vmatprep.subr.mxu0 0.0
    %309 = vmatpush1.msra.mxu0 0.0
    %310 = vmatprep.subr.mxu0 0.0
    %311 = vmatpush1.msra.mxu0 0.0
    %312 = vmatprep.subr.mxu0 0.0
    %313 = vmatpush1.msra.mxu0 0.0
    %314 = vmatprep.mubr.f32.mxu0 0.0
    %315 = vmatmul.mubr.f32.gmra.mrb[0].mxu0 %v245
    %v316 = vpop.f32.mrb[0].mxu0
    %v317 = vadd.f32 0.0, %v316
    %v318 = vpop.f32.mrb[0].mxu0
    %319 = vmatprep.mubr.f32.mxu0 0.0
    %320 = vmatmul.mubr.f32.gmra.mrb[0].mxu0 %v246
    %v321 = vpop.f32.mrb[0].mxu0
    %v322 = vadd.f32 0.0, %v321
    %v323 = vpop.f32.mrb[0].mxu0
    %324 = vmatprep.mubr.f32.mxu0 0.0
    %325 = vmatmul.mubr.f32.gmra.mrb[0].mxu0 %v247
    %v326 = vpop.f32.mrb[0].mxu0
    %v327 = vadd.f32 0.0, %v326
    %v328 = vpop.f32.mrb[0].mxu0
    %329 = vmatprep.mubr.f32.mxu0 0.0
    %330 = vmatmul.mubr.f32.gmra.mrb[0].mxu0 %v248
    %v331 = vpop.f32.mrb[0].mxu0
    %v332 = vadd.f32 0.0, %v331
    %v333 = vpop.f32.mrb[0].mxu0
    %334 = vmatprep.mubr.f32.mxu0 0.0
    %335 = vmatmul.mubr.f32.gmra.mrb[0].mxu0 %v249
    %v336 = vpop.f32.mrb[0].mxu0
    %v337 = vadd.f32 0.0, %v336
    %v338 = vpop.f32.mrb[0].mxu0
    %339 = vdwg.mxu0
    %v340 = vmax.f32 %v317, 0.0
    %v341 = vmax.f32 %v322, 0.0
    %v342 = vmax.f32 %v327, 0.0
    %v343 = vmax.f32 %v332, 0.0
    %v344 = vmax.f32 %v337, 0.0
    %v345 = vld [vmem:[%s3] sm:$0xff]
    %vm346 = vcmask 326656
    %v348 = vsel %vm346, %v345, 0
    %350 = vmatprep.subr.mxu0 0.0
    %351 = vmatpush1.msra.mxu0 %v340
    %352 = vmatprep.subr.mxu0 0.0
    %353 = vmatpush1.msra.mxu0 %v341
    %354 = vmatprep.subr.mxu0 0.0
    %355 = vmatpush1.msra.mxu0 %v342
    %356 = vmatprep.subr.mxu0 0.0
    %357 = vmatpush1.msra.mxu0 %v343
    %358 = vmatprep.subr.mxu0 0.0
    %359 = vmatpush1.msra.mxu0 %v344
    %360 = vmatprep.subr.mxu0 0.0
    %361 = vmatpush1.msra.mxu0 0.0
    %362 = vmatprep.subr.mxu0 0.0
    %363 = vmatpush1.msra.mxu0 0.0
    %364 = vmatprep.subr.mxu0 0.0
    %365 = vmatpush1.msra.mxu0 0.0
    %366 = vmatprep.subr.mxu0 0.0
    %367 = vmatpush1.msra.mxu0 0.0
    %368 = vmatprep.subr.mxu0 0.0
    %369 = vmatpush1.msra.mxu0 0.0
    %370 = vmatprep.subr.mxu0 0.0
    %371 = vmatpush1.msra.mxu0 0.0
    %372 = vmatprep.subr.mxu0 0.0
    %373 = vmatpush1.msra.mxu0 0.0
    %374 = vmatprep.subr.mxu0 0.0
    %375 = vmatpush1.msra.mxu0 0.0
    %376 = vmatprep.subr.mxu0 0.0
    %377 = vmatpush1.msra.mxu0 0.0
    %378 = vmatprep.subr.mxu0 0.0
    %379 = vmatpush1.msra.mxu0 0.0
    %380 = vmatprep.subr.mxu0 0.0
    %381 = vmatpush1.msra.mxu0 0.0
    %382 = vmatprep.subr.mxu0 0.0
    %383 = vmatpush1.msra.mxu0 0.0
    %384 = vmatprep.subr.mxu0 0.0
    %385 = vmatpush1.msra.mxu0 0.0
    %386 = vmatprep.subr.mxu0 0.0
    %387 = vmatpush1.msra.mxu0 0.0
    %388 = vmatprep.subr.mxu0 0.0
    %389 = vmatpush1.msra.mxu0 0.0
    %390 = vmatprep.subr.mxu0 0.0
    %391 = vmatpush1.msra.mxu0 0.0
    %392 = vmatprep.subr.mxu0 0.0
    %393 = vmatpush1.msra.mxu0 0.0
    %394 = vmatprep.subr.mxu0 0.0
    %395 = vmatpush1.msra.mxu0 0.0
    %396 = vmatprep.subr.mxu0 0.0
    %397 = vmatpush1.msra.mxu0 0.0
    %398 = vmatprep.subr.mxu0 0.0
    %399 = vmatpush1.msra.mxu0 0.0
    %400 = vmatprep.subr.mxu0 0.0
    %401 = vmatpush1.msra.mxu0 0.0
    %402 = vmatprep.subr.mxu0 0.0
    %403 = vmatpush1.msra.mxu0 0.0
    %404 = vmatprep.subr.mxu0 0.0
    %405 = vmatpush1.msra.mxu0 0.0
    %406 = vmatprep.subr.mxu0 0.0
    %407 = vmatpush1.msra.mxu0 0.0
    %408 = vmatprep.subr.mxu0 0.0
    %409 = vmatpush1.msra.mxu0 0.0
    %410 = vmatprep.subr.mxu0 0.0
    %411 = vmatpush1.msra.mxu0 0.0
    %412 = vmatprep.subr.mxu0 0.0
    %413 = vmatpush1.msra.mxu0 0.0
    %414 = vmatprep.mubr.f32.mxu0 0.0
    %415 = vmatmul.mubr.f32.gmra.mrb[0].mxu0 %v348
    %v416 = vpop.f32.mrb[0].mxu0
    %v417 = vadd.f32 0.0, %v416
    %v418 = vpop.f32.mrb[0].mxu0
    %419 = vdwg.mxu0
    %420 = vst [vmem:[#allocation2] sm:$0x1] %v417
    // Predicated region
    $region18: #{tpu_custom_call.1} parent=1 // pred_check
      _
    $region19: #{tpu_custom_call.1} parent=1 // pred_check_branch
      %422 = sbr.rel (0) target = $region21
    $region20: #{tpu_custom_call.1} parent=1 // pred_region
      %s424 = ssub.s32 16, 16
      %425 = vsyncadd [#allocation3], %s424
      %s427 = sshll.u32 [#allocation2], 4
      %s428 = int_to_ptr.vmem [resolvable:$true] %s427
      %430 = dma.vmem_to_hbm [thread:$0]  %s428, 16, %s4, [#allocation3]
    $region21: #{tpu_custom_call.1} parent=1 // pred_fallthru
      _
    // Predicated region
    $region22: #{tpu_custom_call.1} parent=1 // pred_check
      _
    $region23: #{tpu_custom_call.1} parent=1 // pred_check_branch
      %432 = sbr.rel (0) target = $region25
    $region24: #{tpu_custom_call.1} parent=1 // pred_region
      %433 = dma.done [#allocation3], 16
    $region25: #{tpu_custom_call.1} parent=1 // pred_fallthru
      _
    %434 = vsyncpa [#allocation3], 1

</llo_original>
